<compile_context>
chip_gen: v7x
topology: tpu7x:2x2x1
jax: 0.10.0
libtpu: 0.0.40
codegen_flags: <defaults>
</compile_context>

<pallas_src>
import math

import jax
import jax.numpy as jnp
import numpy as np
from jax import lax
from jax.experimental import pallas as pl
from jax.experimental.pallas import tpu as pltpu

# ------------------ static configuration (small synthetic shapes) ------------
B = 2
IN_PLANES = 2            # in_planes
PLANES = 4               # planes (in_planes != planes -> shortcut conv + norm)
H = W = 8
K = 3                    # kernel_size
P = K // 2
NCOMP = 4                # mv components for metric [1, 1]
CIN4 = IN_PLANES * NCOMP
COUT4 = PLANES * NCOMP
HP, WP = H + 2 * P, W + 2 * P
N = HP * WP              # flattened padded spatial positions per batch element
NPOS = B * N             # both batch elements folded onto the lane axis (200)
NPOS_PAD = 256           # lane axis padded to a multiple of 128
S = 16                   # halo lanes on each side (>= P * WP + P = 11)
LTOT = S + NPOS_PAD + S  # extended lane extent of the staged buffers (288)
KK = K * K
CENTER_TAP = P * K + P   # tap index (ky=P, kx=P) -> center window == unshifted x
# start lane (into the extended buffer) of the window for conv tap (ky, kx)
TAP_STARTS = tuple(S + (ky - P) * WP + (kx - P)
                   for ky in range(K) for kx in range(K))
EPS = 1e-6
GELU_C = 2.0 * math.sqrt(2.0 / math.pi)


# ------------------ in-kernel helpers (pure VPU/XLU, no tiny matmuls) --------
def _mv_layernorm(x):
    # x: (NCOMP*PLANES, NP), rows component-major (row = k*PLANES + c).
    sq = x * x
    ssq = sq[0:PLANES]
    for k in range(1, NCOMP):
        ssq = ssq + sq[k * PLANES:(k + 1) * PLANES]      # per-channel sum of squares
    norms = jnp.sqrt(ssq + EPS)                          # (PLANES, NP)
    ssum = norms[0:1]
    for c in range(1, PLANES):
        ssum = ssum + norms[c:c + 1]                     # (1, NP) sum over channels
    inv = float(PLANES) / ssum                           # 1/mean: one divide on 1 row
    return x * inv                                       # sublane-broadcast multiply


def _mv_gelu(x):
    # x: (NCOMP*PLANES, NP), component-major rows; gates = scalar components.
    gates = x[0:PLANES]                                  # (PLANES, NP)
    z = GELU_C * (gates + 0.044715 * gates * gates * gates)
    wgt = 1.0 / (1.0 + jnp.exp(-z))                      # (PLANES, NP)
    # rows are component-major (row = k*PLANES + c), so tiling the per-channel
    # gate NCOMP times along sublanes broadcasts it to every component block.
    wfull = jnp.concatenate([wgt] * NCOMP, axis=0)       # (NCOMP*PLANES, NP)
    return wfull * x


def _interior_mask():
    # (1, NPOS_PAD) float mask: 1 on real non-pad-ring positions, 0 elsewhere.
    # Generated in-kernel from iota (float floor-divide trick, no int div/rem).
    p = lax.broadcasted_iota(jnp.int32, (1, NPOS_PAD), 1).astype(jnp.float32)
    b = jnp.floor((p + 0.5) * (1.0 / N))
    m = p - b * N                                        # flat index within its block
    y = jnp.floor((m + 0.5) * (1.0 / WP))
    xc = m - y * WP
    inside = ((y >= P) & (y < P + H) & (xc >= P) & (xc < P + W) & (p < B * N))
    return inside.astype(jnp.float32)


# ------------------ the Pallas kernel (whole block in one grid step) ---------
def _block_kernel(x_ref, w1s_ref, w2_ref, o_ref, hid_ref):
    x = x_ref[...]                                       # (CIN4, LTOT) f32
    mask = _interior_mask()                              # (1, NPOS_PAD)

    # conv1 + 1x1 shortcut fused into ONE im2col matmul (bf16 operands,
    # f32 accumulation); shortcut weights live at the center-tap columns.
    slab1 = jnp.concatenate(
        [x[:, s0:s0 + NPOS_PAD] for s0 in TAP_STARTS], axis=0)  # (KK*CIN4, NPOS_PAD)
    acc = jnp.dot(w1s_ref[...], slab1.astype(jnp.bfloat16),
                  preferred_element_type=jnp.float32)    # (2*COUT4, NPOS_PAD)
    acc1 = acc[0:COUT4]                                  # conv1 result
    sc = _mv_layernorm(acc[COUT4:2 * COUT4])             # shortcut conv + MVLayerNorm

    h = _mv_gelu(_mv_layernorm(acc1)) * mask             # re-zero pad ring / tail

    # stage hidden for conv2: zero only the two halo bands, overwrite interior
    hid_ref[:, pl.ds(0, S)] = jnp.zeros((COUT4, S), jnp.float32)
    hid_ref[:, pl.ds(S + NPOS_PAD, S)] = jnp.zeros((COUT4, S), jnp.float32)
    hid_ref[:, pl.ds(S, NPOS_PAD)] = h

    hx = hid_ref[...]                                    # (COUT4, LTOT)
    slab2 = jnp.concatenate(
        [hx[:, s0:s0 + NPOS_PAD] for s0 in TAP_STARTS], axis=0)  # (KK*COUT4, NPOS_PAD)
    acc2 = jnp.dot(w2_ref[...], slab2.astype(jnp.bfloat16),
                   preferred_element_type=jnp.float32)
    out = _mv_layernorm(acc2)

    o_ref[...] = _mv_gelu(out + sc)                      # lane-dense (16, 256) store


# component-major (k*planes + c)  <-  geometric-tensor (c*NCOMP + k) perms
_PERM_IN = np.array([c * NCOMP + k for k in range(NCOMP) for c in range(IN_PLANES)])
_PERM_OUT = np.array([c * NCOMP + k for k in range(NCOMP) for c in range(PLANES)])


# ------------------ wrapper (layout plumbing + pallas_call) -------------------
@jax.jit
def steerable_basic_block(x_mv, w1, w2, ws):
    # x_mv: (B, IN_PLANES, H, W, 4)  -- PyTorch MV layout
    # w1: (KK, CIN4, COUT4), w2: (KK, COUT4, COUT4), ws: (CIN4, COUT4)
    #     (geometric-tensor channel order c*4 + k, tap order ky*K + kx)

    # activations: component-major channels on sublanes, positions on lanes
    xk = jnp.transpose(x_mv, (4, 1, 0, 2, 3)).reshape(CIN4, B, H, W)
    xk = jnp.pad(xk, ((0, 0), (0, 0), (P, P), (P, P)))            # zero pad ring
    xk = xk.reshape(CIN4, NPOS)
    x_ext = jnp.pad(xk, ((0, 0), (S, S + NPOS_PAD - NPOS)))       # (CIN4, LTOT)

    # weights: permute to component-major order, flatten to 2-D bf16 slabs
    w1p = w1[:, _PERM_IN, :][:, :, _PERM_OUT]
    W1 = jnp.transpose(w1p, (2, 0, 1)).reshape(COUT4, KK * CIN4)
    wsp = ws[_PERM_IN, :][:, _PERM_OUT]                           # (CIN4, COUT4)
    # embed the 1x1 shortcut weights at the center-tap columns -> fused matmul
    WS_full = jnp.zeros((COUT4, KK * CIN4), jnp.float32)
    WS_full = WS_full.at[:, CENTER_TAP * CIN4:(CENTER_TAP + 1) * CIN4].set(wsp.T)
    W1S = jnp.concatenate([W1, WS_full], axis=0).astype(jnp.bfloat16)  # (32, 72)

    w2p = w2[:, _PERM_OUT, :][:, :, _PERM_OUT]
    W2 = jnp.transpose(w2p, (2, 0, 1)).reshape(COUT4, KK * COUT4).astype(jnp.bfloat16)

    out_flat = pl.pallas_call(
        _block_kernel,
        out_shape=jax.ShapeDtypeStruct((COUT4, NPOS_PAD), jnp.float32),
        grid=(1,),
        in_specs=[
            pl.BlockSpec((CIN4, LTOT), lambda i: (0, 0)),
            pl.BlockSpec((2 * COUT4, KK * CIN4), lambda i: (0, 0)),
            pl.BlockSpec((COUT4, KK * COUT4), lambda i: (0, 0)),
        ],
        out_specs=pl.BlockSpec((COUT4, NPOS_PAD), lambda i: (0, 0)),
        scratch_shapes=[pltpu.VMEM((COUT4, LTOT), jnp.float32)],
        # Batch is folded into this single step, so there is no parallel grid
        # axis left to shard across v7x's two TensorCores at this size.
        compiler_params=pltpu.CompilerParams(dimension_semantics=("arbitrary",)),
    )(x_ext, W1S, W2)

    # back to the PyTorch MV layout
    out = out_flat[:, :NPOS].reshape(COUT4, B, HP, WP)[:, :, P:P + H, P:P + W]
    out = out.reshape(NCOMP, PLANES, B, H, W)
    return jnp.transpose(out, (2, 1, 3, 4, 0))            # (B, PLANES, H, W, 4)


# ------------------ pure-JAX reference for verification ----------------------
def reference(x_mv, w1, w2, ws):
    x_gt = jnp.transpose(x_mv, (0, 2, 3, 1, 4)).reshape(B, H, W, CIN4)

    def conv(x, w):
        ci, co = w.shape[1], w.shape[2]
        wh = w.reshape(K, K, ci, co)
        return lax.conv_general_dilated(
            x, wh, (1, 1), "SAME",
            dimension_numbers=("NHWC", "HWIO", "NHWC"),
            precision=lax.Precision.HIGHEST)

    def mv_norm(x):
        xr = x.reshape(*x.shape[:-1], -1, NCOMP)
        norms = jnp.sqrt(jnp.sum(xr * xr, -1) + EPS)
        mean = jnp.mean(norms, axis=-1, keepdims=True)[..., None]
        return (xr / mean).reshape(x.shape)

    def mv_gelu(x):
        xr = x.reshape(*x.shape[:-1], -1, NCOMP)
        g = xr[..., :1]
        wgt = jax.nn.sigmoid(GELU_C * (g + 0.044715 * g ** 3))
        return (wgt * xr).reshape(x.shape)

    h = mv_gelu(mv_norm(conv(x_gt, w1)))
    o = mv_norm(conv(h, w2))
    sc = mv_norm(jnp.einsum("bhwc,cd->bhwd", x_gt, ws,
                            precision=lax.Precision.HIGHEST))
    out = mv_gelu(o + sc)
    out = out.reshape(B, H, W, PLANES, NCOMP)
    return jnp.transpose(out, (0, 3, 1, 2, 4))


# ------------------ main ------------------------------------------------------
if __name__ == "__main__":
    key = jax.random.PRNGKey(0)
    k1, k2, k3, kx = jax.random.split(key, 4)

    # deterministic He-style init (fan_in = in_channels * k * k), gt channel order
    w1 = jax.random.normal(k1, (KK, CIN4, COUT4), jnp.float32) * math.sqrt(2.0 / (CIN4 * KK))
    w2 = jax.random.normal(k2, (KK, COUT4, COUT4), jnp.float32) * math.sqrt(2.0 / (COUT4 * KK))
    ws = jax.random.normal(k3, (CIN4, COUT4), jnp.float32) * math.sqrt(2.0 / CIN4)
    x_mv = jax.random.normal(kx, (B, IN_PLANES, H, W, NCOMP), jnp.float32)

    out = steerable_basic_block(x_mv, w1, w2, ws)
    jax.block_until_ready(out)

    ref = reference(x_mv, w1, w2, ws)
    assert out.shape == (B, PLANES, H, W, NCOMP), out.shape
    # bf16 MXU operands with f32 accumulation vs a pure-f32 HIGHEST-precision
    # reference -> slightly looser tolerance than 1e-2.
    np.testing.assert_allclose(np.asarray(out), np.asarray(ref), rtol=2e-2, atol=2e-2)
    print("KERNEL_OK")
</pallas_src>

<mosaic_0001>
module attributes {stable_mosaic.version = 11 : i64} {
  func.func @_block_kernel(%arg0: i32, %arg1: memref<8x288xf32, #tpu.memory_space<vmem>>, %arg2: memref<32x72xbf16, #tpu.memory_space<vmem>>, %arg3: memref<16x144xbf16, #tpu.memory_space<vmem>>, %arg4: memref<16x256xf32, #tpu.memory_space<vmem>>, %arg5: memref<16x288xf32, #tpu.memory_space<vmem>>) attributes {dimension_semantics = [#tpu.dimension_semantics<arbitrary>], iteration_bounds = array<i64: 1>, scalar_prefetch = 0 : i64, scratch_operands = 1 : i64, tpu.core_type = #tpu.core_type<tc>, window_params = [{pipeline_mode = #tpu.pipeline_mode<synchronous>, transform_indices = @transform_0, window_bounds = array<i64: 8, 288>}, {pipeline_mode = #tpu.pipeline_mode<synchronous>, transform_indices = @transform_1, window_bounds = array<i64: 32, 72>}, {pipeline_mode = #tpu.pipeline_mode<synchronous>, transform_indices = @transform_2, window_bounds = array<i64: 16, 144>}, {pipeline_mode = #tpu.pipeline_mode<synchronous>, transform_indices = @transform_3, window_bounds = array<i64: 16, 256>}]} {
    %c0 = arith.constant 0 : index
    %c0_0 = arith.constant 0 : index
    %0 = vector.load %arg1[%c0, %c0_0] : memref<8x288xf32, #tpu.memory_space<vmem>>, vector<8x288xf32>
    %1 = tpu.iota {dimensions = array<i32: 1>} : vector<1x256xi32>
    %2 = arith.sitofp %1 : vector<1x256xi32> to vector<1x256xf32>
    %cst = arith.constant 5.000000e-01 : f32
    %3 = vector.broadcast %cst : f32 to vector<1x256xf32>
    %4 = arith.addf %2, %3 : vector<1x256xf32>
    %cst_1 = arith.constant 0.00999999977 : f32
    %5 = vector.broadcast %cst_1 : f32 to vector<1x256xf32>
    %6 = arith.mulf %4, %5 : vector<1x256xf32>
    %7 = math.floor %6 : vector<1x256xf32>
    %cst_2 = arith.constant 1.000000e+02 : f32
    %8 = vector.broadcast %cst_2 : f32 to vector<1x256xf32>
    %9 = arith.mulf %7, %8 : vector<1x256xf32>
    %10 = arith.subf %2, %9 : vector<1x256xf32>
    %cst_3 = arith.constant 5.000000e-01 : f32
    %11 = vector.broadcast %cst_3 : f32 to vector<1x256xf32>
    %12 = arith.addf %10, %11 : vector<1x256xf32>
    %cst_4 = arith.constant 1.000000e-01 : f32
    %13 = vector.broadcast %cst_4 : f32 to vector<1x256xf32>
    %14 = arith.mulf %12, %13 : vector<1x256xf32>
    %15 = math.floor %14 : vector<1x256xf32>
    %cst_5 = arith.constant 1.000000e+01 : f32
    %16 = vector.broadcast %cst_5 : f32 to vector<1x256xf32>
    %17 = arith.mulf %15, %16 : vector<1x256xf32>
    %18 = arith.subf %10, %17 : vector<1x256xf32>
    %cst_6 = arith.constant 1.000000e+00 : f32
    %19 = vector.broadcast %cst_6 : f32 to vector<1x256xf32>
    %20 = arith.cmpf oge, %15, %19 : vector<1x256xf32>
    %cst_7 = arith.constant 9.000000e+00 : f32
    %21 = vector.broadcast %cst_7 : f32 to vector<1x256xf32>
    %22 = arith.cmpf olt, %15, %21 : vector<1x256xf32>
    %23 = arith.andi %20, %22 : vector<1x256xi1>
    %cst_8 = arith.constant 1.000000e+00 : f32
    %24 = vector.broadcast %cst_8 : f32 to vector<1x256xf32>
    %25 = arith.cmpf oge, %18, %24 : vector<1x256xf32>
    %26 = arith.andi %23, %25 : vector<1x256xi1>
    %cst_9 = arith.constant 9.000000e+00 : f32
    %27 = vector.broadcast %cst_9 : f32 to vector<1x256xf32>
    %28 = arith.cmpf olt, %18, %27 : vector<1x256xf32>
    %29 = arith.andi %26, %28 : vector<1x256xi1>
    %cst_10 = arith.constant 2.000000e+02 : f32
    %30 = vector.broadcast %cst_10 : f32 to vector<1x256xf32>
    %31 = arith.cmpf olt, %2, %30 : vector<1x256xf32>
    %32 = arith.andi %29, %31 : vector<1x256xi1>
    %33 = arith.extui %32 : vector<1x256xi1> to vector<1x256xi32>
    %34 = arith.sitofp %33 : vector<1x256xi32> to vector<1x256xf32>
    %35 = vector.extract_strided_slice %0 {offsets = [0, 5], sizes = [8, 256], strides = [1, 1]} : vector<8x288xf32> to vector<8x256xf32>
    %36 = vector.extract_strided_slice %0 {offsets = [0, 6], sizes = [8, 256], strides = [1, 1]} : vector<8x288xf32> to vector<8x256xf32>
    %37 = vector.extract_strided_slice %0 {offsets = [0, 7], sizes = [8, 256], strides = [1, 1]} : vector<8x288xf32> to vector<8x256xf32>
    %38 = vector.extract_strided_slice %0 {offsets = [0, 15], sizes = [8, 256], strides = [1, 1]} : vector<8x288xf32> to vector<8x256xf32>
    %39 = vector.extract_strided_slice %0 {offsets = [0, 16], sizes = [8, 256], strides = [1, 1]} : vector<8x288xf32> to vector<8x256xf32>
    %40 = vector.extract_strided_slice %0 {offsets = [0, 17], sizes = [8, 256], strides = [1, 1]} : vector<8x288xf32> to vector<8x256xf32>
    %41 = vector.extract_strided_slice %0 {offsets = [0, 25], sizes = [8, 256], strides = [1, 1]} : vector<8x288xf32> to vector<8x256xf32>
    %42 = vector.extract_strided_slice %0 {offsets = [0, 26], sizes = [8, 256], strides = [1, 1]} : vector<8x288xf32> to vector<8x256xf32>
    %43 = vector.extract_strided_slice %0 {offsets = [0, 27], sizes = [8, 256], strides = [1, 1]} : vector<8x288xf32> to vector<8x256xf32>
    %44 = tpu.concatenate %35, %36, %37, %38, %39, %40, %41, %42, %43 in 0 : vector<8x256xf32>, vector<8x256xf32>, vector<8x256xf32>, vector<8x256xf32>, vector<8x256xf32>, vector<8x256xf32>, vector<8x256xf32>, vector<8x256xf32>, vector<8x256xf32> -> vector<72x256xf32>
    %c0_11 = arith.constant 0 : index
    %c0_12 = arith.constant 0 : index
    %45 = vector.load %arg2[%c0_11, %c0_12] : memref<32x72xbf16, #tpu.memory_space<vmem>>, vector<32x72xbf16>
    %46 = arith.truncf %44 : vector<72x256xf32> to vector<72x256xbf16>
    %cst_13 = arith.constant dense<0.000000e+00> : vector<32x256xf32>
    %47 = tpu.matmul %45, %46, %cst_13 {dimension_numbers = #tpu.dot_dimension_numbers<[1], [0], [0], [1], [0, 0, 1, 1], [], []>} : vector<32x72xbf16>, vector<72x256xbf16>, vector<32x256xf32> -> vector<32x256xf32>
    %48 = vector.extract_strided_slice %47 {offsets = [0, 0], sizes = [16, 256], strides = [1, 1]} : vector<32x256xf32> to vector<16x256xf32>
    %49 = vector.extract_strided_slice %47 {offsets = [16, 0], sizes = [16, 256], strides = [1, 1]} : vector<32x256xf32> to vector<16x256xf32>
    %50 = arith.mulf %49, %49 : vector<16x256xf32>
    %51 = vector.extract_strided_slice %50 {offsets = [0, 0], sizes = [4, 256], strides = [1, 1]} : vector<16x256xf32> to vector<4x256xf32>
    %52 = vector.extract_strided_slice %50 {offsets = [4, 0], sizes = [4, 256], strides = [1, 1]} : vector<16x256xf32> to vector<4x256xf32>
    %53 = arith.addf %51, %52 : vector<4x256xf32>
    %54 = vector.extract_strided_slice %50 {offsets = [8, 0], sizes = [4, 256], strides = [1, 1]} : vector<16x256xf32> to vector<4x256xf32>
    %55 = arith.addf %53, %54 : vector<4x256xf32>
    %56 = vector.extract_strided_slice %50 {offsets = [12, 0], sizes = [4, 256], strides = [1, 1]} : vector<16x256xf32> to vector<4x256xf32>
    %57 = arith.addf %55, %56 : vector<4x256xf32>
    %cst_14 = arith.constant 9.99999997E-7 : f32
    %58 = vector.broadcast %cst_14 : f32 to vector<4x256xf32>
    %59 = arith.addf %57, %58 : vector<4x256xf32>
    %60 = math.sqrt %59 : vector<4x256xf32>
    %61 = vector.extract_strided_slice %60 {offsets = [0, 0], sizes = [1, 256], strides = [1, 1]} : vector<4x256xf32> to vector<1x256xf32>
    %62 = vector.extract_strided_slice %60 {offsets = [1, 0], sizes = [1, 256], strides = [1, 1]} : vector<4x256xf32> to vector<1x256xf32>
    %63 = arith.addf %61, %62 : vector<1x256xf32>
    %64 = vector.extract_strided_slice %60 {offsets = [2, 0], sizes = [1, 256], strides = [1, 1]} : vector<4x256xf32> to vector<1x256xf32>
    %65 = arith.addf %63, %64 : vector<1x256xf32>
    %66 = vector.extract_strided_slice %60 {offsets = [3, 0], sizes = [1, 256], strides = [1, 1]} : vector<4x256xf32> to vector<1x256xf32>
    %67 = arith.addf %65, %66 : vector<1x256xf32>
    %cst_15 = arith.constant 4.000000e+00 : f32
    %68 = vector.broadcast %cst_15 : f32 to vector<1x256xf32>
    %69 = arith.divf %68, %67 : vector<1x256xf32>
    %70 = vector.broadcast %69 : vector<1x256xf32> to vector<16x256xf32>
    %71 = arith.mulf %49, %70 : vector<16x256xf32>
    %72 = arith.mulf %48, %48 : vector<16x256xf32>
    %73 = vector.extract_strided_slice %72 {offsets = [0, 0], sizes = [4, 256], strides = [1, 1]} : vector<16x256xf32> to vector<4x256xf32>
    %74 = vector.extract_strided_slice %72 {offsets = [4, 0], sizes = [4, 256], strides = [1, 1]} : vector<16x256xf32> to vector<4x256xf32>
    %75 = arith.addf %73, %74 : vector<4x256xf32>
    %76 = vector.extract_strided_slice %72 {offsets = [8, 0], sizes = [4, 256], strides = [1, 1]} : vector<16x256xf32> to vector<4x256xf32>
    %77 = arith.addf %75, %76 : vector<4x256xf32>
    %78 = vector.extract_strided_slice %72 {offsets = [12, 0], sizes = [4, 256], strides = [1, 1]} : vector<16x256xf32> to vector<4x256xf32>
    %79 = arith.addf %77, %78 : vector<4x256xf32>
    %cst_16 = arith.constant 9.99999997E-7 : f32
    %80 = vector.broadcast %cst_16 : f32 to vector<4x256xf32>
    %81 = arith.addf %79, %80 : vector<4x256xf32>
    %82 = math.sqrt %81 : vector<4x256xf32>
    %83 = vector.extract_strided_slice %82 {offsets = [0, 0], sizes = [1, 256], strides = [1, 1]} : vector<4x256xf32> to vector<1x256xf32>
    %84 = vector.extract_strided_slice %82 {offsets = [1, 0], sizes = [1, 256], strides = [1, 1]} : vector<4x256xf32> to vector<1x256xf32>
    %85 = arith.addf %83, %84 : vector<1x256xf32>
    %86 = vector.extract_strided_slice %82 {offsets = [2, 0], sizes = [1, 256], strides = [1, 1]} : vector<4x256xf32> to vector<1x256xf32>
    %87 = arith.addf %85, %86 : vector<1x256xf32>
    %88 = vector.extract_strided_slice %82 {offsets = [3, 0], sizes = [1, 256], strides = [1, 1]} : vector<4x256xf32> to vector<1x256xf32>
    %89 = arith.addf %87, %88 : vector<1x256xf32>
    %cst_17 = arith.constant 4.000000e+00 : f32
    %90 = vector.broadcast %cst_17 : f32 to vector<1x256xf32>
    %91 = arith.divf %90, %89 : vector<1x256xf32>
    %92 = vector.broadcast %91 : vector<1x256xf32> to vector<16x256xf32>
    %93 = arith.mulf %48, %92 : vector<16x256xf32>
    %94 = vector.extract_strided_slice %93 {offsets = [0, 0], sizes = [4, 256], strides = [1, 1]} : vector<16x256xf32> to vector<4x256xf32>
    %cst_18 = arith.constant 4.471500e-02 : f32
    %95 = vector.broadcast %cst_18 : f32 to vector<4x256xf32>
    %96 = arith.mulf %95, %94 : vector<4x256xf32>
    %97 = arith.mulf %96, %94 : vector<4x256xf32>
    %98 = arith.mulf %97, %94 : vector<4x256xf32>
    %99 = arith.addf %94, %98 : vector<4x256xf32>
    %cst_19 = arith.constant 1.59576917 : f32
    %100 = vector.broadcast %cst_19 : f32 to vector<4x256xf32>
    %101 = arith.mulf %100, %99 : vector<4x256xf32>
    %cst_20 = arith.constant 0.000000e+00 : f32
    %102 = vector.broadcast %cst_20 : f32 to vector<4x256xf32>
    %103 = arith.subf %102, %101 : vector<4x256xf32>
    %104 = math.exp %103 : vector<4x256xf32>
    %cst_21 = arith.constant 1.000000e+00 : f32
    %105 = vector.broadcast %cst_21 : f32 to vector<4x256xf32>
    %106 = arith.addf %105, %104 : vector<4x256xf32>
    %cst_22 = arith.constant 1.000000e+00 : f32
    %107 = vector.broadcast %cst_22 : f32 to vector<4x256xf32>
    %108 = arith.divf %107, %106 : vector<4x256xf32>
    %109 = tpu.concatenate %108, %108, %108, %108 in 0 : vector<4x256xf32>, vector<4x256xf32>, vector<4x256xf32>, vector<4x256xf32> -> vector<16x256xf32>
    %110 = arith.mulf %109, %93 : vector<16x256xf32>
    %111 = vector.broadcast %34 : vector<1x256xf32> to vector<16x256xf32>
    %112 = arith.mulf %110, %111 : vector<16x256xf32>
    %cst_23 = arith.constant 0.000000e+00 : f32
    %113 = vector.broadcast %cst_23 : f32 to vector<16x16xf32>
    %c0_24 = arith.constant 0 : index
    %c0_25 = arith.constant 0 : index
    %114 = vector.load %arg5[%c0_24, %c0_25] : memref<16x288xf32, #tpu.memory_space<vmem>>, vector<16x16xf32>
    tpu.vector_store %arg5[%c0_24, %c0_25], %113 {strides = array<i32>} : memref<16x288xf32, #tpu.memory_space<vmem>>, vector<16x16xf32>,
    %cst_26 = arith.constant 0.000000e+00 : f32
    %115 = vector.broadcast %cst_26 : f32 to vector<16x16xf32>
    %c0_27 = arith.constant 0 : index
    %c272 = arith.constant 272 : index
    %116 = vector.load %arg5[%c0_27, %c272] : memref<16x288xf32, #tpu.memory_space<vmem>>, vector<16x16xf32>
    tpu.vector_store %arg5[%c0_27, %c272], %115 {strides = array<i32>} : memref<16x288xf32, #tpu.memory_space<vmem>>, vector<16x16xf32>,
    %c0_28 = arith.constant 0 : index
    %c16 = arith.constant 16 : index
    %117 = vector.load %arg5[%c0_28, %c16] : memref<16x288xf32, #tpu.memory_space<vmem>>, vector<16x256xf32>
    tpu.vector_store %arg5[%c0_28, %c16], %112 {strides = array<i32>} : memref<16x288xf32, #tpu.memory_space<vmem>>, vector<16x256xf32>,
    %c0_29 = arith.constant 0 : index
    %c0_30 = arith.constant 0 : index
    %118 = vector.load %arg5[%c0_29, %c0_30] : memref<16x288xf32, #tpu.memory_space<vmem>>, vector<16x288xf32>
    %119 = vector.extract_strided_slice %118 {offsets = [0, 5], sizes = [16, 256], strides = [1, 1]} : vector<16x288xf32> to vector<16x256xf32>
    %120 = vector.extract_strided_slice %118 {offsets = [0, 6], sizes = [16, 256], strides = [1, 1]} : vector<16x288xf32> to vector<16x256xf32>
    %121 = vector.extract_strided_slice %118 {offsets = [0, 7], sizes = [16, 256], strides = [1, 1]} : vector<16x288xf32> to vector<16x256xf32>
    %122 = vector.extract_strided_slice %118 {offsets = [0, 15], sizes = [16, 256], strides = [1, 1]} : vector<16x288xf32> to vector<16x256xf32>
    %123 = vector.extract_strided_slice %118 {offsets = [0, 16], sizes = [16, 256], strides = [1, 1]} : vector<16x288xf32> to vector<16x256xf32>
    %124 = vector.extract_strided_slice %118 {offsets = [0, 17], sizes = [16, 256], strides = [1, 1]} : vector<16x288xf32> to vector<16x256xf32>
    %125 = vector.extract_strided_slice %118 {offsets = [0, 25], sizes = [16, 256], strides = [1, 1]} : vector<16x288xf32> to vector<16x256xf32>
    %126 = vector.extract_strided_slice %118 {offsets = [0, 26], sizes = [16, 256], strides = [1, 1]} : vector<16x288xf32> to vector<16x256xf32>
    %127 = vector.extract_strided_slice %118 {offsets = [0, 27], sizes = [16, 256], strides = [1, 1]} : vector<16x288xf32> to vector<16x256xf32>
    %128 = tpu.concatenate %119, %120, %121, %122, %123, %124, %125, %126, %127 in 0 : vector<16x256xf32>, vector<16x256xf32>, vector<16x256xf32>, vector<16x256xf32>, vector<16x256xf32>, vector<16x256xf32>, vector<16x256xf32>, vector<16x256xf32>, vector<16x256xf32> -> vector<144x256xf32>
    %c0_31 = arith.constant 0 : index
    %c0_32 = arith.constant 0 : index
    %129 = vector.load %arg3[%c0_31, %c0_32] : memref<16x144xbf16, #tpu.memory_space<vmem>>, vector<16x144xbf16>
    %130 = arith.truncf %128 : vector<144x256xf32> to vector<144x256xbf16>
    %cst_33 = arith.constant dense<0.000000e+00> : vector<16x256xf32>
    %131 = tpu.matmul %129, %130, %cst_33 {dimension_numbers = #tpu.dot_dimension_numbers<[1], [0], [0], [1], [0, 0, 1, 1], [], []>} : vector<16x144xbf16>, vector<144x256xbf16>, vector<16x256xf32> -> vector<16x256xf32>
    %132 = arith.mulf %131, %131 : vector<16x256xf32>
    %133 = vector.extract_strided_slice %132 {offsets = [0, 0], sizes = [4, 256], strides = [1, 1]} : vector<16x256xf32> to vector<4x256xf32>
    %134 = vector.extract_strided_slice %132 {offsets = [4, 0], sizes = [4, 256], strides = [1, 1]} : vector<16x256xf32> to vector<4x256xf32>
    %135 = arith.addf %133, %134 : vector<4x256xf32>
    %136 = vector.extract_strided_slice %132 {offsets = [8, 0], sizes = [4, 256], strides = [1, 1]} : vector<16x256xf32> to vector<4x256xf32>
    %137 = arith.addf %135, %136 : vector<4x256xf32>
    %138 = vector.extract_strided_slice %132 {offsets = [12, 0], sizes = [4, 256], strides = [1, 1]} : vector<16x256xf32> to vector<4x256xf32>
    %139 = arith.addf %137, %138 : vector<4x256xf32>
    %cst_34 = arith.constant 9.99999997E-7 : f32
    %140 = vector.broadcast %cst_34 : f32 to vector<4x256xf32>
    %141 = arith.addf %139, %140 : vector<4x256xf32>
    %142 = math.sqrt %141 : vector<4x256xf32>
    %143 = vector.extract_strided_slice %142 {offsets = [0, 0], sizes = [1, 256], strides = [1, 1]} : vector<4x256xf32> to vector<1x256xf32>
    %144 = vector.extract_strided_slice %142 {offsets = [1, 0], sizes = [1, 256], strides = [1, 1]} : vector<4x256xf32> to vector<1x256xf32>
    %145 = arith.addf %143, %144 : vector<1x256xf32>
    %146 = vector.extract_strided_slice %142 {offsets = [2, 0], sizes = [1, 256], strides = [1, 1]} : vector<4x256xf32> to vector<1x256xf32>
    %147 = arith.addf %145, %146 : vector<1x256xf32>
    %148 = vector.extract_strided_slice %142 {offsets = [3, 0], sizes = [1, 256], strides = [1, 1]} : vector<4x256xf32> to vector<1x256xf32>
    %149 = arith.addf %147, %148 : vector<1x256xf32>
    %cst_35 = arith.constant 4.000000e+00 : f32
    %150 = vector.broadcast %cst_35 : f32 to vector<1x256xf32>
    %151 = arith.divf %150, %149 : vector<1x256xf32>
    %152 = vector.broadcast %151 : vector<1x256xf32> to vector<16x256xf32>
    %153 = arith.mulf %131, %152 : vector<16x256xf32>
    %154 = arith.addf %153, %71 : vector<16x256xf32>
    %155 = vector.extract_strided_slice %154 {offsets = [0, 0], sizes = [4, 256], strides = [1, 1]} : vector<16x256xf32> to vector<4x256xf32>
    %cst_36 = arith.constant 4.471500e-02 : f32
    %156 = vector.broadcast %cst_36 : f32 to vector<4x256xf32>
    %157 = arith.mulf %156, %155 : vector<4x256xf32>
    %158 = arith.mulf %157, %155 : vector<4x256xf32>
    %159 = arith.mulf %158, %155 : vector<4x256xf32>
    %160 = arith.addf %155, %159 : vector<4x256xf32>
    %cst_37 = arith.constant 1.59576917 : f32
    %161 = vector.broadcast %cst_37 : f32 to vector<4x256xf32>
    %162 = arith.mulf %161, %160 : vector<4x256xf32>
    %cst_38 = arith.constant 0.000000e+00 : f32
    %163 = vector.broadcast %cst_38 : f32 to vector<4x256xf32>
    %164 = arith.subf %163, %162 : vector<4x256xf32>
    %165 = math.exp %164 : vector<4x256xf32>
    %cst_39 = arith.constant 1.000000e+00 : f32
    %166 = vector.broadcast %cst_39 : f32 to vector<4x256xf32>
    %167 = arith.addf %166, %165 : vector<4x256xf32>
    %cst_40 = arith.constant 1.000000e+00 : f32
    %168 = vector.broadcast %cst_40 : f32 to vector<4x256xf32>
    %169 = arith.divf %168, %167 : vector<4x256xf32>
    %170 = tpu.concatenate %169, %169, %169, %169 in 0 : vector<4x256xf32>, vector<4x256xf32>, vector<4x256xf32>, vector<4x256xf32> -> vector<16x256xf32>
    %171 = arith.mulf %170, %154 : vector<16x256xf32>
    %c0_41 = arith.constant 0 : index
    %c0_42 = arith.constant 0 : index
    %172 = vector.load %arg4[%c0_41, %c0_42] : memref<16x256xf32, #tpu.memory_space<vmem>>, vector<16x256xf32>
    tpu.vector_store %arg4[%c0_41, %c0_42], %171 {strides = array<i32>} : memref<16x256xf32, #tpu.memory_space<vmem>>, vector<16x256xf32>,
    return
  }
  func.func @transform_0(%arg0: i32) -> (i32, i32) {
    %c0_i32 = arith.constant 0 : i32
    %c0_i32_0 = arith.constant 0 : i32
    %c0_i32_1 = arith.constant 0 : i32
    return %c0_i32, %c0_i32_0 : i32, i32
  }
  func.func @transform_1(%arg0: i32) -> (i32, i32) {
    %c0_i32 = arith.constant 0 : i32
    %c0_i32_0 = arith.constant 0 : i32
    %c0_i32_1 = arith.constant 0 : i32
    return %c0_i32, %c0_i32_0 : i32, i32
  }
  func.func @transform_2(%arg0: i32) -> (i32, i32) {
    %c0_i32 = arith.constant 0 : i32
    %c0_i32_0 = arith.constant 0 : i32
    %c0_i32_1 = arith.constant 0 : i32
    return %c0_i32, %c0_i32_0 : i32, i32
  }
  func.func @transform_3(%arg0: i32) -> (i32, i32) {
    %c0_i32 = arith.constant 0 : i32
    %c0_i32_0 = arith.constant 0 : i32
    %c0_i32_1 = arith.constant 0 : i32
    return %c0_i32, %c0_i32_0 : i32, i32
  }
}

</mosaic_0001>

<llo_original>
// kernel: steerable_basic_block.1
$region0: #{steerable_basic_block.1}
  #allocation0 [shape = 'u32[]', space=smem, size = 0x4, offset = 0x4, fixed_abs, tag = 'smem constant byte address 0x4 - core index']
  #allocation1 [shape = 'u32[144,128]{1,0:T(1,128)}', space=vmem, size = 0x12000, scoped, tag = 'internal scratch']
  #allocation2 [shape = 'f32[16,288]{1,0:T(8,128)}', space=vmem, size = 0x6000, scoped, tag = 'scratch operand']
  %s0 = inlined_call_operand.vmem [shape: f32[8,288], index: 0, kind: input, shape index: {}]
  %s1 = inlined_call_operand.vmem [shape: bf16[32,72], index: 1, kind: input, shape index: {}]
  %s2 = inlined_call_operand.vmem [shape: bf16[16,144], index: 2, kind: input, shape index: {}]
  %s3 = inlined_call_operand.vmem [shape: f32[16,256], index: 3, kind: output, shape index: {}]
  %s4 = sld [smem:[#allocation0]]
  $region22: #{steerable_basic_block.1} parent=0
    _
  %s6 = ssub.s32 1, %s4
  %s7 = scalar_select 0, %s6, %s4
  // Predicated region
  $region2: #{steerable_basic_block.1} parent=0 // pred_check
    _
  $region3: #{steerable_basic_block.1} parent=0 // pred_check_branch
    %9 = sbr.rel (0) target = $region5
  $region4: #{steerable_basic_block.1} parent=0 // pred_region
    _
  $region5: #{steerable_basic_block.1} parent=0 // pred_fallthru
    _
  // Predicated region
  $region6: #{steerable_basic_block.1} parent=0 // pred_check
    _
  $region7: #{steerable_basic_block.1} parent=0 // pred_check_branch
    %11 = sbr.rel (0) target = $region9
  $region8: #{steerable_basic_block.1} parent=0 // pred_region
    _
  $region9: #{steerable_basic_block.1} parent=0 // pred_fallthru
    _
  // Predicated region
  $region10: #{steerable_basic_block.1} parent=0 // pred_check
    _
  $region11: #{steerable_basic_block.1} parent=0 // pred_check_branch
    %13 = sbr.rel (0) target = $region13
  $region12: #{steerable_basic_block.1} parent=0 // pred_region
    _
  $region13: #{steerable_basic_block.1} parent=0 // pred_fallthru
    _
  %v15 = vld [vmem:[%s0] sm:$0xff]
  %v16 = vld [vmem:[%s0 + $0x8] sm:$0xff]
  %v17 = vld [vmem:[%s0 + $0x10] sm:$0xff]
  %v18 = vlaneseq
  %v19 = vand.u32 %v18, 127
  %v20 = vadd.s32 %v19, 128
  %v21 = vcvt.s32.f32 %v19
  %v22 = vcvt.s32.f32 %v20
  %v23 = vadd.f32 %v21, 0.5
  %v24 = vadd.f32 %v22, 0.5
  %v25 = vmul.f32 %v23, 0.01
  %v26 = vmul.f32 %v24, 0.01
  %v27 = vfloor.f32 %v25
  %v28 = vfloor.f32 %v26
  %v29 = vmul.f32 %v27, 100.0
  %v30 = vmul.f32 %v28, 100.0
  %v31 = vsub.f32 %v21, %v29
  %v32 = vsub.f32 %v22, %v30
  %v33 = vadd.f32 %v31, 0.5
  %v34 = vadd.f32 %v32, 0.5
  %v35 = vmul.f32 %v33, 0.1
  %v36 = vmul.f32 %v34, 0.1
  %v37 = vfloor.f32 %v35
  %v38 = vfloor.f32 %v36
  %v39 = vmul.f32 %v37, 10.0
  %v40 = vmul.f32 %v38, 10.0
  %v41 = vsub.f32 %v31, %v39
  %v42 = vsub.f32 %v32, %v40
  %vm43 = vcmp.ge.f32.partialorder %v37, 1.0
  %vm44 = vcmp.ge.f32.partialorder %v38, 1.0
  %vm45 = vcmp.lt.f32.partialorder %v37, 9.0
  %vm46 = vcmp.lt.f32.partialorder %v38, 9.0
  %vm47 = vmand %vm43, %vm45
  %vm48 = vmand %vm44, %vm46
  %vm49 = vcmp.ge.f32.partialorder %v41, 1.0
  %vm50 = vcmp.ge.f32.partialorder %v42, 1.0
  %vm51 = vmand %vm47, %vm49
  %vm52 = vmand %vm48, %vm50
  %vm53 = vcmp.lt.f32.partialorder %v41, 9.0
  %vm54 = vcmp.lt.f32.partialorder %v42, 9.0
  %vm55 = vmand %vm51, %vm53
  %vm56 = vmand %vm52, %vm54
  %vm57 = vcmp.lt.f32.partialorder %v21, 200.0
  %vm58 = vcmp.lt.f32.partialorder %v22, 200.0
  %vm59 = vmand %vm55, %vm57
  %vm60 = vmand %vm56, %vm58
  %v61 = vsel %vm59, 1, 0
  %v62 = vsel %vm60, 1, 0
  %v63 = vcvt.s32.f32 %v61
  %v64 = vcvt.s32.f32 %v62
  %68 = vrot.lane.b32.xlu0 %v15, 127
  %v69 = vpop.permute.xlu0 %68
  %70 = vrot.lane.b32.xlu0 %v16, 127
  %v71 = vpop.permute.xlu0 %70
  %72 = vrot.lane.b32.xlu0 %v17, 127
  %v73 = vpop.permute.xlu0 %72
  %vm74 = vcmask 1039360
  %v75 = vsel %vm74, %v69, %v71
  %v76 = vsel %vm74, %v71, %v73
  %80 = vrot.lane.b32.xlu0 %v15, 126
  %v81 = vpop.permute.xlu0 %80
  %82 = vrot.lane.b32.xlu0 %v16, 126
  %v83 = vpop.permute.xlu0 %82
  %84 = vrot.lane.b32.xlu0 %v17, 126
  %v85 = vpop.permute.xlu0 %84
  %vm86 = vcmask 1031168
  %v87 = vsel %vm86, %v81, %v83
  %v88 = vsel %vm86, %v83, %v85
  %92 = vrot.lane.b32.xlu0 %v15, 118
  %v93 = vpop.permute.xlu0 %92
  %94 = vrot.lane.b32.xlu0 %v16, 118
  %v95 = vpop.permute.xlu0 %94
  %96 = vrot.lane.b32.xlu0 %v17, 118
  %v97 = vpop.permute.xlu0 %96
  %vm98 = vcmask 965632
  %v99 = vsel %vm98, %v93, %v95
  %v100 = vsel %vm98, %v95, %v97
  %104 = vrot.lane.b32.xlu0 %v15, 117
  %v105 = vpop.permute.xlu0 %104
  %106 = vrot.lane.b32.xlu0 %v16, 117
  %v107 = vpop.permute.xlu0 %106
  %108 = vrot.lane.b32.xlu0 %v17, 117
  %v109 = vpop.permute.xlu0 %108
  %vm110 = vcmask 957440
  %v111 = vsel %vm110, %v105, %v107
  %v112 = vsel %vm110, %v107, %v109
  %116 = vrot.lane.b32.xlu0 %v15, 116
  %v117 = vpop.permute.xlu0 %116
  %118 = vrot.lane.b32.xlu0 %v16, 116
  %v119 = vpop.permute.xlu0 %118
  %120 = vrot.lane.b32.xlu0 %v17, 116
  %v121 = vpop.permute.xlu0 %120
  %vm122 = vcmask 949248
  %v123 = vsel %vm122, %v117, %v119
  %v124 = vsel %vm122, %v119, %v121
  %128 = vrot.lane.b32.xlu0 %v15, 108
  %v129 = vpop.permute.xlu0 %128
  %130 = vrot.lane.b32.xlu0 %v16, 108
  %v131 = vpop.permute.xlu0 %130
  %132 = vrot.lane.b32.xlu0 %v17, 108
  %v133 = vpop.permute.xlu0 %132
  %vm134 = vcmask 883712
  %v135 = vsel %vm134, %v129, %v131
  %v136 = vsel %vm134, %v131, %v133
  %140 = vrot.lane.b32.xlu0 %v15, 107
  %v141 = vpop.permute.xlu0 %140
  %142 = vrot.lane.b32.xlu0 %v16, 107
  %v143 = vpop.permute.xlu0 %142
  %144 = vrot.lane.b32.xlu0 %v17, 107
  %v145 = vpop.permute.xlu0 %144
  %vm146 = vcmask 875520
  %v147 = vsel %vm146, %v141, %v143
  %v148 = vsel %vm146, %v143, %v145
  %152 = vrot.lane.b32.xlu0 %v15, 106
  %v153 = vpop.permute.xlu0 %152
  %154 = vrot.lane.b32.xlu0 %v16, 106
  %v155 = vpop.permute.xlu0 %154
  %156 = vrot.lane.b32.xlu0 %v17, 106
  %v157 = vpop.permute.xlu0 %156
  %vm158 = vcmask 867328
  %v159 = vsel %vm158, %v153, %v155
  %v160 = vsel %vm158, %v155, %v157
  %v164 = vld [vmem:[%s1] sm:$0xf]
  %v165 = vld [vmem:[%s1 + $0x4] sm:$0xf]
  %v166 = vld [vmem:[%s1 + $0x8] sm:$0xf]
  %v167 = vld [vmem:[%s1 + $0xc] sm:$0xf]
  %v168 = vpack.c.bf16 %v75, %v15
  %v169 = vpack.c.bf16 %v76, %v16
  %v170 = vpack.c.bf16 %v73, %v17
  %v171 = vpack.c.bf16 %v99, %v87
  %v172 = vpack.c.bf16 %v100, %v88
  %v173 = vpack.c.bf16 %v97, %v85
  %v174 = vpack.c.bf16 %v123, %v111
  %v175 = vpack.c.bf16 %v124, %v112
  %v176 = vpack.c.bf16 %v121, %v109
  %v177 = vpack.c.bf16 %v147, %v135
  %v178 = vpack.c.bf16 %v148, %v136
  %v179 = vpack.c.bf16 %v145, %v133
  %v180 = vpack.c.bf16 %v159, %v159
  %v181 = vpack.c.bf16 %v160, %v160
  %v182 = vpack.c.bf16 %v157, %v157
  %v187 = vunpack.c.l.b16 %v164
  %v188 = vunpack.c.l.b16 %v165
  %v189 = vunpack.c.l.b16 %v166
  %v190 = vunpack.c.l.b16 %v167
  %v191 = vpack.c.b16 %v188, %v187
  %v192 = vpack.c.b16 %v190, %v189
  %208 = vrot.lane.b32.xlu0 %v168, 123
  %v209 = vpop.permute.xlu0 %208
  %210 = vrot.lane.b32.xlu0 %v169, 123
  %v211 = vpop.permute.xlu0 %210
  %212 = vrot.lane.b32.xlu0 %v170, 123
  %v213 = vpop.permute.xlu0 %212
  %214 = vrot.lane.b32.xlu0 %v171, 123
  %v215 = vpop.permute.xlu0 %214
  %216 = vrot.lane.b32.xlu0 %v172, 123
  %v217 = vpop.permute.xlu0 %216
  %218 = vrot.lane.b32.xlu0 %v173, 123
  %v219 = vpop.permute.xlu0 %218
  %220 = vrot.lane.b32.xlu0 %v174, 123
  %v221 = vpop.permute.xlu0 %220
  %222 = vrot.lane.b32.xlu0 %v175, 123
  %v223 = vpop.permute.xlu0 %222
  %224 = vrot.lane.b32.xlu0 %v176, 123
  %v225 = vpop.permute.xlu0 %224
  %226 = vrot.lane.b32.xlu0 %v177, 123
  %v227 = vpop.permute.xlu0 %226
  %228 = vrot.lane.b32.xlu0 %v178, 123
  %v229 = vpop.permute.xlu0 %228
  %230 = vrot.lane.b32.xlu0 %v179, 123
  %v231 = vpop.permute.xlu0 %230
  %232 = vrot.lane.b32.xlu0 %v180, 123
  %v233 = vpop.permute.xlu0 %232
  %234 = vrot.lane.b32.xlu0 %v181, 123
  %v235 = vpop.permute.xlu0 %234
  %236 = vrot.lane.b32.xlu0 %v182, 123
  %v237 = vpop.permute.xlu0 %236
  %vm238 = vcmask 1006592
  %v239 = vsel %vm238, %v209, %v211
  %v240 = vsel %vm238, %v211, %v213
  %v241 = vsel %vm238, %v215, %v217
  %v242 = vsel %vm238, %v217, %v219
  %v243 = vsel %vm238, %v221, %v223
  %v244 = vsel %vm238, %v223, %v225
  %v245 = vsel %vm238, %v227, %v229
  %v246 = vsel %vm238, %v229, %v231
  %v247 = vsel %vm238, %v233, %v235
  %v248 = vsel %vm238, %v235, %v237
  %vm257 = vcmask 588800
  %v259 = vsel %vm257, %v191, 0
  %v262 = vsel %vm257, %v192, 0
  %vm264 = vcmask 1043456
  %v266 = vsel %vm264, %v247, 0
  %v269 = vsel %vm264, %v248, 0
  %271 = vmatprep.subr.bf16.mxu0 %v240
  %272 = vmatpush1.bf16.msra.mxu0 %v239
  %273 = vmatprep.subr.bf16.mxu0 %v242
  %274 = vmatpush1.bf16.msra.mxu0 %v241
  %275 = vmatprep.subr.bf16.mxu0 %v244
  %276 = vmatpush1.bf16.msra.mxu0 %v243
  %277 = vmatprep.subr.bf16.mxu0 %v246
  %278 = vmatpush1.bf16.msra.mxu0 %v245
  %279 = vmatprep.subr.bf16.mxu0 %v269
  %280 = vmatpush1.bf16.msra.mxu0 %v266
  %281 = vmatprep.subr.bf16.mxu0 0
  %282 = vmatpush1.bf16.msra.mxu0 0
  %283 = vmatprep.subr.bf16.mxu0 0
  %284 = vmatpush1.bf16.msra.mxu0 0
  %285 = vmatprep.subr.bf16.mxu0 0
  %286 = vmatpush1.bf16.msra.mxu0 0
  %287 = vmatprep.subr.bf16.mxu0 0
  %288 = vmatpush1.bf16.msra.mxu0 0
  %289 = vmatprep.subr.bf16.mxu0 0
  %290 = vmatpush1.bf16.msra.mxu0 0
  %291 = vmatprep.subr.bf16.mxu0 0
  %292 = vmatpush1.bf16.msra.mxu0 0
  %293 = vmatprep.subr.bf16.mxu0 0
  %294 = vmatpush1.bf16.msra.mxu0 0
  %295 = vmatprep.subr.bf16.mxu0 0
  %296 = vmatpush1.bf16.msra.mxu0 0
  %297 = vmatprep.subr.bf16.mxu0 0
  %298 = vmatpush1.bf16.msra.mxu0 0
  %299 = vmatprep.subr.bf16.mxu0 0
  %300 = vmatpush1.bf16.msra.mxu0 0
  %301 = vmatprep.subr.bf16.mxu0 0
  %302 = vmatpush1.bf16.msra.mxu0 0
  %303 = vmatprep.mubr.bf16.mxu0 0
  %304 = vmatmul.mubr.bf16.gmra.mrb[0].mxu0 %v259
  %v305 = vpop.f32.mrb[0].mxu0
  %v306 = vadd.f32 0.0, %v305
  %v307 = vpop.f32.mrb[0].mxu0
  %v308 = vadd.f32 0.0, %v307
  %v309 = vpop.f32.mrb[0].mxu0
  %v310 = vadd.f32 0.0, %v309
  %v311 = vpop.f32.mrb[0].mxu0
  %v312 = vadd.f32 0.0, %v311
  %313 = vmatprep.mubr.bf16.mxu0 0
  %314 = vmatmul.mubr.bf16.gmra.mrb[0].mxu0 %v262
  %v315 = vpop.f32.mrb[0].mxu0
  %v316 = vadd.f32 0.0, %v315
  %v317 = vpop.f32.mrb[0].mxu0
  %v318 = vadd.f32 0.0, %v317
  %v319 = vpop.f32.mrb[0].mxu0
  %v320 = vadd.f32 0.0, %v319
  %v321 = vpop.f32.mrb[0].mxu0
  %v322 = vadd.f32 0.0, %v321
  %323 = vdwg.mxu0
  %v324 = vmul.f32 %v316, %v316
  %v325 = vmul.f32 %v318, %v318
  %v326 = vmul.f32 %v320, %v320
  %v327 = vmul.f32 %v322, %v322
  %v330 = vrot.slane %v324, 4
  %v331 = vrot.slane %v325, 4
  %v334 = vadd.f32 %v324, %v330
  %v335 = vadd.f32 %v325, %v331
  %v336 = vadd.f32 %v334, %v326
  %v337 = vadd.f32 %v335, %v327
  %v340 = vrot.slane %v326, 4
  %v341 = vrot.slane %v327, 4
  %v344 = vadd.f32 %v336, %v340
  %v345 = vadd.f32 %v337, %v341
  %v346 = vadd.f32 %v344, 1e-06
  %v347 = vadd.f32 %v345, 1e-06
  %v348 = vrsqrt.pop %v346
  %v349 = vmul.f32 %v346, %v348
  %vm350 = vcmp.eq.f32.partialorder %v346, inf
  %v351 = vsel %vm350, %v346, %v349
  %vm352 = vcmp.eq.f32.partialorder %v346, 0.0
  %v353 = vand.u32 %v346, 2147483648
  %v354 = vsel %vm352, %v353, %v351
  %v355 = vrsqrt.pop %v347
  %v356 = vmul.f32 %v347, %v355
  %vm357 = vcmp.eq.f32.partialorder %v347, inf
  %v358 = vsel %vm357, %v347, %v356
  %vm359 = vcmp.eq.f32.partialorder %v347, 0.0
  %v360 = vand.u32 %v347, 2147483648
  %v361 = vsel %vm359, %v360, %v358
  %v364 = vrot.slane %v354, 1
  %v365 = vrot.slane %v361, 1
  %v368 = vadd.f32 %v354, %v364
  %v369 = vadd.f32 %v361, %v365
  %v370 = vrot.slane %v354, 2
  %v371 = vrot.slane %v361, 2
  %v374 = vadd.f32 %v368, %v370
  %v375 = vadd.f32 %v369, %v371
  %v376 = vrot.slane %v354, 3
  %v377 = vrot.slane %v361, 3
  %v380 = vadd.f32 %v374, %v376
  %v381 = vadd.f32 %v375, %v377
  %v382 = vrcp.pop %v380
  %v383 = vmul.f32 4.0, %v382
  %v384 = vrcp.pop %v381
  %v385 = vmul.f32 4.0, %v384
  %v386 = vlaneseq
  %v387 = vshrl.u32 %v386, 7
  %v388 = vsub.s32 0, %v387
  %v389 = vrot.slane %v383, %v388
  %v390 = vlaneseq
  %v391 = vshrl.u32 %v390, 7
  %v392 = vsub.s32 0, %v391
  %v393 = vrot.slane %v385, %v392
  %v394 = vmul.f32 %v316, %v389
  %v395 = vmul.f32 %v318, %v393
  %v396 = vmul.f32 %v320, %v389
  %v397 = vmul.f32 %v322, %v393
  %v398 = vmul.f32 %v306, %v306
  %v399 = vmul.f32 %v308, %v308
  %v400 = vmul.f32 %v310, %v310
  %v401 = vmul.f32 %v312, %v312
  %v404 = vrot.slane %v398, 4
  %v405 = vrot.slane %v399, 4
  %v408 = vadd.f32 %v398, %v404
  %v409 = vadd.f32 %v399, %v405
  %v410 = vadd.f32 %v408, %v400
  %v411 = vadd.f32 %v409, %v401
  %v414 = vrot.slane %v400, 4
  %v415 = vrot.slane %v401, 4
  %v418 = vadd.f32 %v410, %v414
  %v419 = vadd.f32 %v411, %v415
  %v420 = vadd.f32 %v418, 1e-06
  %v421 = vadd.f32 %v419, 1e-06
  %v422 = vrsqrt.pop %v420
  %v423 = vmul.f32 %v420, %v422
  %vm424 = vcmp.eq.f32.partialorder %v420, inf
  %v425 = vsel %vm424, %v420, %v423
  %vm426 = vcmp.eq.f32.partialorder %v420, 0.0
  %v427 = vand.u32 %v420, 2147483648
  %v428 = vsel %vm426, %v427, %v425
  %v429 = vrsqrt.pop %v421
  %v430 = vmul.f32 %v421, %v429
  %vm431 = vcmp.eq.f32.partialorder %v421, inf
  %v432 = vsel %vm431, %v421, %v430
  %vm433 = vcmp.eq.f32.partialorder %v421, 0.0
  %v434 = vand.u32 %v421, 2147483648
  %v435 = vsel %vm433, %v434, %v432
  %v438 = vrot.slane %v428, 1
  %v439 = vrot.slane %v435, 1
  %v442 = vadd.f32 %v428, %v438
  %v443 = vadd.f32 %v435, %v439
  %v444 = vrot.slane %v428, 2
  %v445 = vrot.slane %v435, 2
  %v448 = vadd.f32 %v442, %v444
  %v449 = vadd.f32 %v443, %v445
  %v450 = vrot.slane %v428, 3
  %v451 = vrot.slane %v435, 3
  %v454 = vadd.f32 %v448, %v450
  %v455 = vadd.f32 %v449, %v451
  %v456 = vrcp.pop %v454
  %v457 = vmul.f32 4.0, %v456
  %v458 = vrcp.pop %v455
  %v459 = vmul.f32 4.0, %v458
  %v460 = vlaneseq
  %v461 = vshrl.u32 %v460, 7
  %v462 = vsub.s32 0, %v461
  %v463 = vrot.slane %v457, %v462
  %v464 = vlaneseq
  %v465 = vshrl.u32 %v464, 7
  %v466 = vsub.s32 0, %v465
  %v467 = vrot.slane %v459, %v466
  %v468 = vmul.f32 %v306, %v463
  %v469 = vmul.f32 %v308, %v467
  %v470 = vmul.f32 %v310, %v463
  %v471 = vmul.f32 %v312, %v467
  %v472 = vmul.f32 %v468, 0.044715
  %v473 = vmul.f32 %v469, 0.044715
  %v474 = vmul.f32 %v472, %v468
  %v475 = vmul.f32 %v473, %v469
  %v476 = vmul.f32 %v474, %v468
  %v477 = vmul.f32 %v475, %v469
  %v478 = vadd.f32 %v468, %v476
  %v479 = vadd.f32 %v469, %v477
  %v480 = vmul.f32 %v478, 1.5957692
  %v481 = vmul.f32 %v479, 1.5957692
  %v482 = vsub.f32 0.0, %v480
  %v483 = vsub.f32 0.0, %v481
  %v484 = vmul.f32 %v482, 1.442695
  %v485 = vpow.pop %v484
  %v486 = vmul.f32 %v483, 1.442695
  %v487 = vpow.pop %v486
  %v488 = vadd.f32 %v485, 1.0
  %v489 = vadd.f32 %v487, 1.0
  %v490 = vrcp.pop %v488
  %v491 = vmul.f32 1.0, %v490
  %v492 = vrcp.pop %v489
  %v493 = vmul.f32 1.0, %v492
  %v496 = vrot.slane %v491, 4
  %v497 = vrot.slane %v493, 4
  %v500 = vsel %vm264, %v491, %v496
  %v501 = vsel %vm264, %v493, %v497
  %v502 = vmul.f32 %v500, %v468
  %v503 = vmul.f32 %v501, %v469
  %v504 = vmul.f32 %v500, %v470
  %v505 = vmul.f32 %v501, %v471
  %v506 = vmul.f32 %v502, %v63
  %v507 = vmul.f32 %v503, %v64
  %v508 = vmul.f32 %v504, %v63
  %v509 = vmul.f32 %v505, %v64
  %vm510 = vcmask 130048
  %511 = vst.msk [vmem:[#allocation2] sm:$0xff] %vm510, 0.0
  %512 = vst.msk [vmem:[#allocation2 + $0x18] sm:$0xff] %vm510, 0.0
  %vm513 = vcmask 261248
  %514 = vst.msk [vmem:[#allocation2 + $0x10] sm:$0xff] %vm513, 0.0
  %515 = vst.msk [vmem:[#allocation2 + $0x28] sm:$0xff] %vm513, 0.0
  %520 = vrot.lane.b32.xlu0 %v506, 16
  %v521 = vpop.permute.xlu0 %520
  %522 = vrot.lane.b32.xlu0 %v507, 16
  %v523 = vpop.permute.xlu0 %522
  %524 = vrot.lane.b32.xlu0 %v508, 16
  %v525 = vpop.permute.xlu0 %524
  %526 = vrot.lane.b32.xlu0 %v509, 16
  %v527 = vpop.permute.xlu0 %526
  %v528 = vsel %vm510, %v521, %v523
  %v529 = vsel %vm510, %v525, %v527
  %vm536 = vcmask 1047680
  %537 = vst.msk [vmem:[#allocation2] sm:$0xff] %vm536, %v521
  %538 = vst [vmem:[#allocation2 + $0x8] sm:$0xff] %v528
  %539 = vst.msk [vmem:[#allocation2 + $0x10] sm:$0xff] %vm510, %v523
  %540 = vst.msk [vmem:[#allocation2 + $0x18] sm:$0xff] %vm536, %v525
  %541 = vst [vmem:[#allocation2 + $0x20] sm:$0xff] %v529
  %542 = vst.msk [vmem:[#allocation2 + $0x28] sm:$0xff] %vm510, %v527
  %v543 = vld [vmem:[#allocation2] sm:$0xff]
  %v544 = vld [vmem:[#allocation2 + $0x8] sm:$0xff]
  %v545 = vld [vmem:[#allocation2 + $0x10] sm:$0xff]
  %v546 = vld [vmem:[#allocation2 + $0x18] sm:$0xff]
  %v547 = vld [vmem:[#allocation2 + $0x20] sm:$0xff]
  %v548 = vld [vmem:[#allocation2 + $0x28] sm:$0xff]
  %555 = vrot.lane.b32.xlu0 %v543, 127
  %v556 = vpop.permute.xlu0 %555
  %557 = vrot.lane.b32.xlu0 %v544, 127
  %v558 = vpop.permute.xlu0 %557
  %559 = vrot.lane.b32.xlu0 %v545, 127
  %v560 = vpop.permute.xlu0 %559
  %561 = vrot.lane.b32.xlu0 %v546, 127
  %v562 = vpop.permute.xlu0 %561
  %563 = vrot.lane.b32.xlu0 %v547, 127
  %v564 = vpop.permute.xlu0 %563
  %565 = vrot.lane.b32.xlu0 %v548, 127
  %v566 = vpop.permute.xlu0 %565
  %v567 = vsel %vm74, %v556, %v558
  %v568 = vsel %vm74, %v558, %v560
  %v569 = vsel %vm74, %v562, %v564
  %v570 = vsel %vm74, %v564, %v566
  %577 = vrot.lane.b32.xlu0 %v543, 126
  %v578 = vpop.permute.xlu0 %577
  %579 = vrot.lane.b32.xlu0 %v544, 126
  %v580 = vpop.permute.xlu0 %579
  %581 = vrot.lane.b32.xlu0 %v545, 126
  %v582 = vpop.permute.xlu0 %581
  %583 = vrot.lane.b32.xlu0 %v546, 126
  %v584 = vpop.permute.xlu0 %583
  %585 = vrot.lane.b32.xlu0 %v547, 126
  %v586 = vpop.permute.xlu0 %585
  %587 = vrot.lane.b32.xlu0 %v548, 126
  %v588 = vpop.permute.xlu0 %587
  %v589 = vsel %vm86, %v578, %v580
  %v590 = vsel %vm86, %v580, %v582
  %v591 = vsel %vm86, %v584, %v586
  %v592 = vsel %vm86, %v586, %v588
  %599 = vrot.lane.b32.xlu0 %v543, 118
  %v600 = vpop.permute.xlu0 %599
  %601 = vrot.lane.b32.xlu0 %v544, 118
  %v602 = vpop.permute.xlu0 %601
  %603 = vrot.lane.b32.xlu0 %v545, 118
  %v604 = vpop.permute.xlu0 %603
  %605 = vrot.lane.b32.xlu0 %v546, 118
  %v606 = vpop.permute.xlu0 %605
  %607 = vrot.lane.b32.xlu0 %v547, 118
  %v608 = vpop.permute.xlu0 %607
  %609 = vrot.lane.b32.xlu0 %v548, 118
  %v610 = vpop.permute.xlu0 %609
  %v611 = vsel %vm98, %v600, %v602
  %v612 = vsel %vm98, %v602, %v604
  %v613 = vsel %vm98, %v606, %v608
  %v614 = vsel %vm98, %v608, %v610
  %621 = vrot.lane.b32.xlu0 %v543, 117
  %v622 = vpop.permute.xlu0 %621
  %623 = vrot.lane.b32.xlu0 %v544, 117
  %v624 = vpop.permute.xlu0 %623
  %625 = vrot.lane.b32.xlu0 %v545, 117
  %v626 = vpop.permute.xlu0 %625
  %627 = vrot.lane.b32.xlu0 %v546, 117
  %v628 = vpop.permute.xlu0 %627
  %629 = vrot.lane.b32.xlu0 %v547, 117
  %v630 = vpop.permute.xlu0 %629
  %631 = vrot.lane.b32.xlu0 %v548, 117
  %v632 = vpop.permute.xlu0 %631
  %v633 = vsel %vm110, %v622, %v624
  %v634 = vsel %vm110, %v624, %v626
  %v635 = vsel %vm110, %v628, %v630
  %v636 = vsel %vm110, %v630, %v632
  %643 = vrot.lane.b32.xlu0 %v543, 116
  %v644 = vpop.permute.xlu0 %643
  %645 = vrot.lane.b32.xlu0 %v544, 116
  %v646 = vpop.permute.xlu0 %645
  %647 = vrot.lane.b32.xlu0 %v545, 116
  %v648 = vpop.permute.xlu0 %647
  %649 = vrot.lane.b32.xlu0 %v546, 116
  %v650 = vpop.permute.xlu0 %649
  %651 = vrot.lane.b32.xlu0 %v547, 116
  %v652 = vpop.permute.xlu0 %651
  %653 = vrot.lane.b32.xlu0 %v548, 116
  %v654 = vpop.permute.xlu0 %653
  %v655 = vsel %vm122, %v644, %v646
  %v656 = vsel %vm122, %v646, %v648
  %v657 = vsel %vm122, %v650, %v652
  %v658 = vsel %vm122, %v652, %v654
  %665 = vrot.lane.b32.xlu0 %v543, 108
  %v666 = vpop.permute.xlu0 %665
  %667 = vrot.lane.b32.xlu0 %v544, 108
  %v668 = vpop.permute.xlu0 %667
  %669 = vrot.lane.b32.xlu0 %v545, 108
  %v670 = vpop.permute.xlu0 %669
  %671 = vrot.lane.b32.xlu0 %v546, 108
  %v672 = vpop.permute.xlu0 %671
  %673 = vrot.lane.b32.xlu0 %v547, 108
  %v674 = vpop.permute.xlu0 %673
  %675 = vrot.lane.b32.xlu0 %v548, 108
  %v676 = vpop.permute.xlu0 %675
  %v677 = vsel %vm134, %v666, %v668
  %v678 = vsel %vm134, %v668, %v670
  %v679 = vsel %vm134, %v672, %v674
  %v680 = vsel %vm134, %v674, %v676
  %687 = vrot.lane.b32.xlu0 %v543, 107
  %v688 = vpop.permute.xlu0 %687
  %689 = vrot.lane.b32.xlu0 %v544, 107
  %v690 = vpop.permute.xlu0 %689
  %691 = vrot.lane.b32.xlu0 %v545, 107
  %v692 = vpop.permute.xlu0 %691
  %693 = vrot.lane.b32.xlu0 %v546, 107
  %v694 = vpop.permute.xlu0 %693
  %695 = vrot.lane.b32.xlu0 %v547, 107
  %v696 = vpop.permute.xlu0 %695
  %697 = vrot.lane.b32.xlu0 %v548, 107
  %v698 = vpop.permute.xlu0 %697
  %v699 = vsel %vm146, %v688, %v690
  %v700 = vsel %vm146, %v690, %v692
  %v701 = vsel %vm146, %v694, %v696
  %v702 = vsel %vm146, %v696, %v698
  %709 = vrot.lane.b32.xlu0 %v543, 106
  %v710 = vpop.permute.xlu0 %709
  %711 = vrot.lane.b32.xlu0 %v544, 106
  %v712 = vpop.permute.xlu0 %711
  %713 = vrot.lane.b32.xlu0 %v545, 106
  %v714 = vpop.permute.xlu0 %713
  %715 = vrot.lane.b32.xlu0 %v546, 106
  %v716 = vpop.permute.xlu0 %715
  %717 = vrot.lane.b32.xlu0 %v547, 106
  %v718 = vpop.permute.xlu0 %717
  %719 = vrot.lane.b32.xlu0 %v548, 106
  %v720 = vpop.permute.xlu0 %719
  %v721 = vsel %vm158, %v710, %v712
  %v722 = vsel %vm158, %v712, %v714
  %v723 = vsel %vm158, %v716, %v718
  %v724 = vsel %vm158, %v718, %v720
  %v731 = vld [vmem:[%s2] sm:$0xff]
  %v732 = vld [vmem:[%s2 + $0x8] sm:$0xff]
  %v733 = vpack.c.bf16 %v546, %v543
  %v734 = vpack.c.bf16 %v547, %v544
  %v735 = vpack.c.bf16 %v548, %v545
  %v736 = vpack.c.bf16 %v569, %v567
  %v737 = vpack.c.bf16 %v570, %v568
  %v738 = vpack.c.bf16 %v566, %v560
  %v739 = vpack.c.bf16 %v591, %v589
  %v740 = vpack.c.bf16 %v592, %v590
  %v741 = vpack.c.bf16 %v588, %v582
  %v742 = vpack.c.bf16 %v613, %v611
  %v743 = vpack.c.bf16 %v614, %v612
  %v744 = vpack.c.bf16 %v610, %v604
  %v745 = vpack.c.bf16 %v635, %v633
  %v746 = vpack.c.bf16 %v636, %v634
  %v747 = vpack.c.bf16 %v632, %v626
  %v748 = vpack.c.bf16 %v657, %v655
  %v749 = vpack.c.bf16 %v658, %v656
  %v750 = vpack.c.bf16 %v654, %v648
  %v751 = vpack.c.bf16 %v679, %v677
  %v752 = vpack.c.bf16 %v680, %v678
  %v753 = vpack.c.bf16 %v676, %v670
  %v754 = vpack.c.bf16 %v701, %v699
  %v755 = vpack.c.bf16 %v702, %v700
  %v756 = vpack.c.bf16 %v698, %v692
  %v757 = vpack.c.bf16 %v723, %v721
  %v758 = vpack.c.bf16 %v724, %v722
  %v759 = vpack.c.bf16 %v720, %v714
  %v762 = vunpack.c.l.b16 %v731
  %v763 = vunpack.c.h.b16 %v731
  %v764 = vunpack.c.l.b16 %v732
  %v765 = vunpack.c.h.b16 %v732
  %v766 = vpack.c.b16 %v764, %v762
  %v767 = vpack.c.b16 %v765, %v763
  %796 = vrot.lane.b32.xlu0 %v733, 123
  %v797 = vpop.permute.xlu0 %796
  %798 = vrot.lane.b32.xlu0 %v734, 123
  %v799 = vpop.permute.xlu0 %798
  %800 = vrot.lane.b32.xlu0 %v735, 123
  %v801 = vpop.permute.xlu0 %800
  %802 = vrot.lane.b32.xlu0 %v736, 123
  %v803 = vpop.permute.xlu0 %802
  %804 = vrot.lane.b32.xlu0 %v737, 123
  %v805 = vpop.permute.xlu0 %804
  %806 = vrot.lane.b32.xlu0 %v738, 123
  %v807 = vpop.permute.xlu0 %806
  %808 = vrot.lane.b32.xlu0 %v739, 123
  %v809 = vpop.permute.xlu0 %808
  %810 = vrot.lane.b32.xlu0 %v740, 123
  %v811 = vpop.permute.xlu0 %810
  %812 = vrot.lane.b32.xlu0 %v741, 123
  %v813 = vpop.permute.xlu0 %812
  %814 = vrot.lane.b32.xlu0 %v742, 123
  %v815 = vpop.permute.xlu0 %814
  %816 = vrot.lane.b32.xlu0 %v743, 123
  %v817 = vpop.permute.xlu0 %816
  %818 = vrot.lane.b32.xlu0 %v744, 123
  %v819 = vpop.permute.xlu0 %818
  %820 = vrot.lane.b32.xlu0 %v745, 123
  %v821 = vpop.permute.xlu0 %820
  %822 = vrot.lane.b32.xlu0 %v746, 123
  %v823 = vpop.permute.xlu0 %822
  %824 = vrot.lane.b32.xlu0 %v747, 123
  %v825 = vpop.permute.xlu0 %824
  %826 = vrot.lane.b32.xlu0 %v748, 123
  %v827 = vpop.permute.xlu0 %826
  %828 = vrot.lane.b32.xlu0 %v749, 123
  %v829 = vpop.permute.xlu0 %828
  %830 = vrot.lane.b32.xlu0 %v750, 123
  %v831 = vpop.permute.xlu0 %830
  %832 = vrot.lane.b32.xlu0 %v751, 123
  %v833 = vpop.permute.xlu0 %832
  %834 = vrot.lane.b32.xlu0 %v752, 123
  %v835 = vpop.permute.xlu0 %834
  %836 = vrot.lane.b32.xlu0 %v753, 123
  %v837 = vpop.permute.xlu0 %836
  %838 = vrot.lane.b32.xlu0 %v754, 123
  %v839 = vpop.permute.xlu0 %838
  %840 = vrot.lane.b32.xlu0 %v755, 123
  %v841 = vpop.permute.xlu0 %840
  %842 = vrot.lane.b32.xlu0 %v756, 123
  %v843 = vpop.permute.xlu0 %842
  %844 = vrot.lane.b32.xlu0 %v757, 123
  %v845 = vpop.permute.xlu0 %844
  %846 = vrot.lane.b32.xlu0 %v758, 123
  %v847 = vpop.permute.xlu0 %846
  %848 = vrot.lane.b32.xlu0 %v759, 123
  %v849 = vpop.permute.xlu0 %848
  %v850 = vsel %vm238, %v797, %v799
  %v851 = vsel %vm238, %v799, %v801
  %v852 = vsel %vm238, %v803, %v805
  %v853 = vsel %vm238, %v805, %v807
  %v854 = vsel %vm238, %v809, %v811
  %v855 = vsel %vm238, %v811, %v813
  %v856 = vsel %vm238, %v815, %v817
  %v857 = vsel %vm238, %v817, %v819
  %v858 = vsel %vm238, %v821, %v823
  %v859 = vsel %vm238, %v823, %v825
  %v860 = vsel %vm238, %v827, %v829
  %v861 = vsel %vm238, %v829, %v831
  %v862 = vsel %vm238, %v833, %v835
  %v863 = vsel %vm238, %v835, %v837
  %v864 = vsel %vm238, %v839, %v841
  %v865 = vsel %vm238, %v841, %v843
  %v866 = vsel %vm238, %v845, %v847
  %v867 = vsel %vm238, %v847, %v849
  %v887 = vsel %vm510, %v767, 0
  %889 = vmatprep.subr.bf16.mxu0 %v851
  %890 = vmatpush1.bf16.msra.mxu0 %v850
  %891 = vmatprep.subr.bf16.mxu0 %v853
  %892 = vmatpush1.bf16.msra.mxu0 %v852
  %893 = vmatprep.subr.bf16.mxu0 %v855
  %894 = vmatpush1.bf16.msra.mxu0 %v854
  %895 = vmatprep.subr.bf16.mxu0 %v857
  %896 = vmatpush1.bf16.msra.mxu0 %v856
  %897 = vmatprep.subr.bf16.mxu0 %v859
  %898 = vmatpush1.bf16.msra.mxu0 %v858
  %899 = vmatprep.subr.bf16.mxu0 %v861
  %900 = vmatpush1.bf16.msra.mxu0 %v860
  %901 = vmatprep.subr.bf16.mxu0 %v863
  %902 = vmatpush1.bf16.msra.mxu0 %v862
  %903 = vmatprep.subr.bf16.mxu0 %v865
  %904 = vmatpush1.bf16.msra.mxu0 %v864
  %905 = vmatprep.subr.bf16.mxu0 %v867
  %906 = vmatpush1.bf16.msra.mxu0 %v866
  %907 = vmatprep.subr.bf16.mxu0 0
  %908 = vmatpush1.bf16.msra.mxu0 0
  %909 = vmatprep.subr.bf16.mxu0 0
  %910 = vmatpush1.bf16.msra.mxu0 0
  %911 = vmatprep.subr.bf16.mxu0 0
  %912 = vmatpush1.bf16.msra.mxu0 0
  %913 = vmatprep.subr.bf16.mxu0 0
  %914 = vmatpush1.bf16.msra.mxu0 0
  %915 = vmatprep.subr.bf16.mxu0 0
  %916 = vmatpush1.bf16.msra.mxu0 0
  %917 = vmatprep.subr.bf16.mxu0 0
  %918 = vmatpush1.bf16.msra.mxu0 0
  %919 = vmatprep.subr.bf16.mxu0 0
  %920 = vmatpush1.bf16.msra.mxu0 0
  %921 = vmatprep.mubr.bf16.mxu0 %v887
  %922 = vmatmul.mubr.bf16.gmra.mrb[0].mxu0 %v766
  %v923 = vpop.f32.mrb[0].mxu0
  %v924 = vadd.f32 0.0, %v923
  %v925 = vpop.f32.mrb[0].mxu0
  %v926 = vadd.f32 0.0, %v925
  %v927 = vpop.f32.mrb[0].mxu0
  %v928 = vadd.f32 0.0, %v927
  %v929 = vpop.f32.mrb[0].mxu0
  %v930 = vadd.f32 0.0, %v929
  %931 = vdwg.mxu0
  %v932 = vmul.f32 %v924, %v924
  %v933 = vmul.f32 %v926, %v926
  %v934 = vmul.f32 %v928, %v928
  %v935 = vmul.f32 %v930, %v930
  %v938 = vrot.slane %v932, 4
  %v939 = vrot.slane %v933, 4
  %v942 = vadd.f32 %v932, %v938
  %v943 = vadd.f32 %v933, %v939
  %v944 = vadd.f32 %v942, %v934
  %v945 = vadd.f32 %v943, %v935
  %v948 = vrot.slane %v934, 4
  %v949 = vrot.slane %v935, 4
  %v952 = vadd.f32 %v944, %v948
  %v953 = vadd.f32 %v945, %v949
  %v954 = vadd.f32 %v952, 1e-06
  %v955 = vadd.f32 %v953, 1e-06
  %v956 = vrsqrt.pop %v954
  %v957 = vmul.f32 %v954, %v956
  %vm958 = vcmp.eq.f32.partialorder %v954, inf
  %v959 = vsel %vm958, %v954, %v957
  %vm960 = vcmp.eq.f32.partialorder %v954, 0.0
  %v961 = vand.u32 %v954, 2147483648
  %v962 = vsel %vm960, %v961, %v959
  %v963 = vrsqrt.pop %v955
  %v964 = vmul.f32 %v955, %v963
  %vm965 = vcmp.eq.f32.partialorder %v955, inf
  %v966 = vsel %vm965, %v955, %v964
  %vm967 = vcmp.eq.f32.partialorder %v955, 0.0
  %v968 = vand.u32 %v955, 2147483648
  %v969 = vsel %vm967, %v968, %v966
  %v972 = vrot.slane %v962, 1
  %v973 = vrot.slane %v969, 1
  %v976 = vadd.f32 %v962, %v972
  %v977 = vadd.f32 %v969, %v973
  %v978 = vrot.slane %v962, 2
  %v979 = vrot.slane %v969, 2
  %v982 = vadd.f32 %v976, %v978
  %v983 = vadd.f32 %v977, %v979
  %v984 = vrot.slane %v962, 3
  %v985 = vrot.slane %v969, 3
  %v988 = vadd.f32 %v982, %v984
  %v989 = vadd.f32 %v983, %v985
  %v990 = vrcp.pop %v988
  %v991 = vmul.f32 4.0, %v990
  %v992 = vrcp.pop %v989
  %v993 = vmul.f32 4.0, %v992
  %v994 = vlaneseq
  %v995 = vshrl.u32 %v994, 7
  %v996 = vsub.s32 0, %v995
  %v997 = vrot.slane %v991, %v996
  %v998 = vlaneseq
  %v999 = vshrl.u32 %v998, 7
  %v1000 = vsub.s32 0, %v999
  %v1001 = vrot.slane %v993, %v1000
  %v1002 = vmul.f32 %v924, %v997
  %v1003 = vmul.f32 %v926, %v1001
  %v1004 = vmul.f32 %v928, %v997
  %v1005 = vmul.f32 %v930, %v1001
  %v1006 = vadd.f32 %v1002, %v394
  %v1007 = vadd.f32 %v1003, %v395
  %v1008 = vadd.f32 %v1004, %v396
  %v1009 = vadd.f32 %v1005, %v397
  %v1010 = vmul.f32 %v1006, 0.044715
  %v1011 = vmul.f32 %v1007, 0.044715
  %v1012 = vmul.f32 %v1010, %v1006
  %v1013 = vmul.f32 %v1011, %v1007
  %v1014 = vmul.f32 %v1012, %v1006
  %v1015 = vmul.f32 %v1013, %v1007
  %v1016 = vadd.f32 %v1006, %v1014
  %v1017 = vadd.f32 %v1007, %v1015
  %v1018 = vmul.f32 %v1016, 1.5957692
  %v1019 = vmul.f32 %v1017, 1.5957692
  %v1020 = vsub.f32 0.0, %v1018
  %v1021 = vsub.f32 0.0, %v1019
  %v1022 = vmul.f32 %v1020, 1.442695
  %v1023 = vpow.pop %v1022
  %v1024 = vmul.f32 %v1021, 1.442695
  %v1025 = vpow.pop %v1024
  %v1026 = vadd.f32 %v1023, 1.0
  %v1027 = vadd.f32 %v1025, 1.0
  %v1028 = vrcp.pop %v1026
  %v1029 = vmul.f32 1.0, %v1028
  %v1030 = vrcp.pop %v1027
  %v1031 = vmul.f32 1.0, %v1030
  %v1034 = vrot.slane %v1029, 4
  %v1035 = vrot.slane %v1031, 4
  %v1038 = vsel %vm264, %v1029, %v1034
  %v1039 = vsel %vm264, %v1031, %v1035
  %v1040 = vmul.f32 %v1038, %v1006
  %v1041 = vmul.f32 %v1039, %v1007
  %v1042 = vmul.f32 %v1038, %v1008
  %v1043 = vmul.f32 %v1039, %v1009
  %1044 = vst [vmem:[%s3] sm:$0xff] %v1040
  %1045 = vst [vmem:[%s3 + $0x8] sm:$0xff] %v1041
  %1046 = vst [vmem:[%s3 + $0x10] sm:$0xff] %v1042
  %1047 = vst [vmem:[%s3 + $0x18] sm:$0xff] %v1043
  // Predicated region
  $region14: #{steerable_basic_block.1} parent=0 // pred_check
    _
  $region15: #{steerable_basic_block.1} parent=0 // pred_check_branch
    %1049 = sbr.rel (0) target = $region17
  $region16: #{steerable_basic_block.1} parent=0 // pred_region
    _
  $region17: #{steerable_basic_block.1} parent=0 // pred_fallthru
    _
  // Predicated region
  $region18: #{steerable_basic_block.1} parent=0 // pred_check
    _
  $region19: #{steerable_basic_block.1} parent=0 // pred_check_branch
    %1051 = sbr.rel (0) target = $region21
  $region20: #{steerable_basic_block.1} parent=0 // pred_region
    _
  $region21: #{steerable_basic_block.1} parent=0 // pred_fallthru
    _

</llo_original>
